<compile_context>
chip_gen: v7x
topology: tpu7x:2x2x1
jax: 0.10.0
libtpu: 0.0.40
codegen_flags: <defaults>
</compile_context>

<pallas_src>
import jax
import jax.numpy as jnp
from jax.experimental import pallas as pl
from jax.experimental.pallas import tpu as pltpu


def _round_up(n, m):
    return pl.cdiv(n, m) * m


def _classifier_kernel(x_ref, t0_ref, t1_ref,
                       w0x_ref, w0t0_ref, w0t1_ref, b0_ref,
                       w1_ref, b1_ref,
                       w2_ref, b2_ref,
                       w3_ref, b3_ref,
                       out_ref):
    f32 = jnp.float32
    cdt = w1_ref.dtype  # bf16 compute dtype for MXU inputs

    # ---- layer 0: concat(x, theta0, theta1) fused via row-split W0 ----
    h = jnp.dot(x_ref[...], w0x_ref[...], preferred_element_type=f32)
    h = h + jnp.dot(t0_ref[...], w0t0_ref[...], preferred_element_type=f32)
    h = h + jnp.dot(t1_ref[...], w0t1_ref[...], preferred_element_type=f32)
    h = jnp.maximum(h + b0_ref[...], 0.0)                     # f32 epilogue

    # ---- hidden layer 1 ----
    h = jnp.dot(h.astype(cdt), w1_ref[...], preferred_element_type=f32)
    h = jnp.maximum(h + b1_ref[...], 0.0)

    # ---- hidden layer 2 ----
    h = jnp.dot(h.astype(cdt), w2_ref[...], preferred_element_type=f32)
    h = jnp.maximum(h + b2_ref[...], 0.0)

    # ---- output layer, lane-dense: (1, H) @ (H, TILE_B) -> (1, TILE_B) ----
    logits = jnp.dot(w3_ref[...], h.astype(cdt).T, preferred_element_type=f32)
    logits = logits + b3_ref[0, 0]                            # scalar bias from SMEM
    out_ref[...] = jax.nn.sigmoid(logits)


def classifier_forward(x, theta0, theta1, params, *, tile_b=1024):
    """x: [B, x_size], theta0/theta1: [B, theta_size]. Returns [B] (squeezed)."""
    B, x_size = x.shape
    theta_size = theta0.shape[1]
    (w0, b0), (w1, b1), (w2, b2), (w3, b3) = params
    H = w1.shape[0]

    cdt = jnp.bfloat16  # HBM / MXU-input dtype; accumulation stays f32 in-kernel

    # Split W0 rows so the concat never materializes in HBM.
    w0x = w0[:x_size].astype(cdt)
    w0t0 = w0[x_size:x_size + theta_size].astype(cdt)
    w0t1 = w0[x_size + theta_size:].astype(cdt)
    w1c, w2c = w1.astype(cdt), w2.astype(cdt)
    w3r = w3.reshape(1, H).astype(cdt)                 # (1, H) row -> lane-dense final matmul
    b0c = b0.reshape(1, H).astype(jnp.float32)
    b1c = b1.reshape(1, H).astype(jnp.float32)
    b2c = b2.reshape(1, H).astype(jnp.float32)
    b3s = b3.reshape(1, 1).astype(jnp.float32)         # scalar, kept in SMEM

    xb = x.astype(cdt)
    t0b = theta0.astype(cdt)
    t1b = theta1.astype(cdt)

    # Tile size: multiple of 128 so the (1, TILE_B) output tile is lane-dense
    # (also satisfies bf16 sublane packing of 16 on the input tiles).
    tile_b = max(128, min(int(tile_b), _round_up(B, 128)))
    tile_b = _round_up(tile_b, 128)
    b_pad = _round_up(B, tile_b)
    if b_pad != B:
        pad = ((0, b_pad - B), (0, 0))
        xb, t0b, t1b = jnp.pad(xb, pad), jnp.pad(t0b, pad), jnp.pad(t1b, pad)
    grid = (b_pad // tile_b,)

    def resident(shape):
        # Full-array block with constant index -> DMA'd once, stays VMEM-resident.
        return pl.BlockSpec(shape, lambda i: (0, 0))

    out = pl.pallas_call(
        _classifier_kernel,
        out_shape=jax.ShapeDtypeStruct((1, b_pad), jnp.float32),
        grid=grid,
        in_specs=[
            pl.BlockSpec((tile_b, x_size), lambda i: (i, 0)),      # x tile
            pl.BlockSpec((tile_b, theta_size), lambda i: (i, 0)),  # theta0 tile
            pl.BlockSpec((tile_b, theta_size), lambda i: (i, 0)),  # theta1 tile
            resident((x_size, H)),                                 # W0[x rows]
            resident((theta_size, H)),                             # W0[theta0 rows]
            resident((theta_size, H)),                             # W0[theta1 rows]
            resident((1, H)),                                      # b0
            resident((H, H)), resident((1, H)),                    # W1, b1
            resident((H, H)), resident((1, H)),                    # W2, b2
            resident((1, H)),                                      # W3 row
            pl.BlockSpec(memory_space=pltpu.MemorySpace.SMEM),     # b3 scalar
        ],
        out_specs=pl.BlockSpec((1, tile_b), lambda i: (0, i)),     # lane-dense output
        compiler_params=pltpu.CompilerParams(
            dimension_semantics=("parallel",)),                    # megacore on v7x
    )(xb, t0b, t1b, w0x, w0t0, w0t1, b0c, w1c, b1c, w2c, b2c, w3r, b3s)

    # torch .squeeze() on [B, 1] -> [B]
    return out.reshape(-1)[:B]


def init_params(key, x_size, theta_size, hidden_size):
    """Deterministic init mimicking torch.nn.Linear (uniform(-1/sqrt(fan_in), +))."""
    in0 = x_size + 2 * theta_size
    dims = [(in0, hidden_size),
            (hidden_size, hidden_size),
            (hidden_size, hidden_size),
            (hidden_size, 1)]
    params = []
    for (fan_in, fan_out) in dims:
        key, kw, kb = jax.random.split(key, 3)
        bound = 1.0 / jnp.sqrt(jnp.float32(fan_in))
        w = jax.random.uniform(kw, (fan_in, fan_out), jnp.float32, -bound, bound)
        b = jax.random.uniform(kb, (1, fan_out), jnp.float32, -bound, bound)
        params.append((w, b))
    return params


if __name__ == "__main__":
    x_size, theta_size, hidden_size = 16, 8, 32
    batch = 8

    key = jax.random.PRNGKey(0)
    k_x, k_t0, k_t1, k_p = jax.random.split(key, 4)
    x = jax.random.normal(k_x, (batch, x_size), jnp.float32)
    theta0 = jax.random.normal(k_t0, (batch, theta_size), jnp.float32)
    theta1 = jax.random.normal(k_t1, (batch, theta_size), jnp.float32)
    params = init_params(k_p, x_size, theta_size, hidden_size)

    out = classifier_forward(x, theta0, theta1, params)
    jax.block_until_ready(out)

    # Pure-JAX f32 reference check (bf16 activation stream -> loosened tolerance).
    x0 = jnp.concatenate([x, theta0, theta1], axis=1)
    h = x0
    for i, (w, b) in enumerate(params):
        h = h @ w + b
        h = jnp.maximum(h, 0.0) if i < 3 else jax.nn.sigmoid(h)
    ref = jnp.squeeze(h, axis=-1)
    assert out.shape == (batch,), out.shape
    assert jnp.allclose(out, ref, atol=2e-2, rtol=2e-2), (out, ref)

    print("KERNEL_OK")
</pallas_src>

<mosaic_0001>
module attributes {stable_mosaic.version = 11 : i64} {
  func.func @_classifier_kernel(%arg0: i32, %arg1: memref<128x16xbf16, #tpu.memory_space<vmem>>, %arg2: memref<128x8xbf16, #tpu.memory_space<vmem>>, %arg3: memref<128x8xbf16, #tpu.memory_space<vmem>>, %arg4: memref<16x32xbf16, #tpu.memory_space<vmem>>, %arg5: memref<8x32xbf16, #tpu.memory_space<vmem>>, %arg6: memref<8x32xbf16, #tpu.memory_space<vmem>>, %arg7: memref<1x32xf32, #tpu.memory_space<vmem>>, %arg8: memref<32x32xbf16, #tpu.memory_space<vmem>>, %arg9: memref<1x32xf32, #tpu.memory_space<vmem>>, %arg10: memref<32x32xbf16, #tpu.memory_space<vmem>>, %arg11: memref<1x32xf32, #tpu.memory_space<vmem>>, %arg12: memref<1x32xbf16, #tpu.memory_space<vmem>>, %arg13: memref<1x1xf32, #tpu.memory_space<smem>>, %arg14: memref<1x128xf32, #tpu.memory_space<vmem>>) attributes {dimension_semantics = [#tpu.dimension_semantics<parallel>], iteration_bounds = array<i64: 1>, scalar_prefetch = 0 : i64, scratch_operands = 0 : i64, tpu.core_type = #tpu.core_type<tc>, window_params = [{transform_indices = @transform_0, window_bounds = array<i64: 128, 16>}, {transform_indices = @transform_1, window_bounds = array<i64: 128, 8>}, {transform_indices = @transform_2, window_bounds = array<i64: 128, 8>}, {pipeline_mode = #tpu.pipeline_mode<synchronous>, transform_indices = @transform_3, window_bounds = array<i64: 16, 32>}, {pipeline_mode = #tpu.pipeline_mode<synchronous>, transform_indices = @transform_4, window_bounds = array<i64: 8, 32>}, {pipeline_mode = #tpu.pipeline_mode<synchronous>, transform_indices = @transform_5, window_bounds = array<i64: 8, 32>}, {pipeline_mode = #tpu.pipeline_mode<synchronous>, transform_indices = @transform_6, window_bounds = array<i64: 1, 32>}, {pipeline_mode = #tpu.pipeline_mode<synchronous>, transform_indices = @transform_7, window_bounds = array<i64: 32, 32>}, {pipeline_mode = #tpu.pipeline_mode<synchronous>, transform_indices = @transform_8, window_bounds = array<i64: 1, 32>}, {pipeline_mode = #tpu.pipeline_mode<synchronous>, transform_indices = @transform_9, window_bounds = array<i64: 32, 32>}, {pipeline_mode = #tpu.pipeline_mode<synchronous>, transform_indices = @transform_10, window_bounds = array<i64: 1, 32>}, {pipeline_mode = #tpu.pipeline_mode<synchronous>, transform_indices = @transform_11, window_bounds = array<i64: 1, 32>}, {transform_indices = @transform_12, window_bounds = array<i64: 1, 1>}, {transform_indices = @transform_13, window_bounds = array<i64: 1, 128>}]} {
    %c0 = arith.constant 0 : index
    %c0_0 = arith.constant 0 : index
    %0 = vector.load %arg1[%c0, %c0_0] : memref<128x16xbf16, #tpu.memory_space<vmem>>, vector<128x16xbf16>
    %c0_1 = arith.constant 0 : index
    %c0_2 = arith.constant 0 : index
    %1 = vector.load %arg4[%c0_1, %c0_2] : memref<16x32xbf16, #tpu.memory_space<vmem>>, vector<16x32xbf16>
    %cst = arith.constant dense<0.000000e+00> : vector<128x32xf32>
    %2 = tpu.matmul %0, %1, %cst {dimension_numbers = #tpu.dot_dimension_numbers<[1], [0], [0], [1], [0, 0, 1, 1], [], []>} : vector<128x16xbf16>, vector<16x32xbf16>, vector<128x32xf32> -> vector<128x32xf32>
    %c0_3 = arith.constant 0 : index
    %c0_4 = arith.constant 0 : index
    %3 = vector.load %arg2[%c0_3, %c0_4] : memref<128x8xbf16, #tpu.memory_space<vmem>>, vector<128x8xbf16>
    %c0_5 = arith.constant 0 : index
    %c0_6 = arith.constant 0 : index
    %4 = vector.load %arg5[%c0_5, %c0_6] : memref<8x32xbf16, #tpu.memory_space<vmem>>, vector<8x32xbf16>
    %cst_7 = arith.constant dense<0.000000e+00> : vector<128x32xf32>
    %5 = tpu.matmul %3, %4, %cst_7 {dimension_numbers = #tpu.dot_dimension_numbers<[1], [0], [0], [1], [0, 0, 1, 1], [], []>} : vector<128x8xbf16>, vector<8x32xbf16>, vector<128x32xf32> -> vector<128x32xf32>
    %6 = arith.addf %2, %5 : vector<128x32xf32>
    %c0_8 = arith.constant 0 : index
    %c0_9 = arith.constant 0 : index
    %7 = vector.load %arg3[%c0_8, %c0_9] : memref<128x8xbf16, #tpu.memory_space<vmem>>, vector<128x8xbf16>
    %c0_10 = arith.constant 0 : index
    %c0_11 = arith.constant 0 : index
    %8 = vector.load %arg6[%c0_10, %c0_11] : memref<8x32xbf16, #tpu.memory_space<vmem>>, vector<8x32xbf16>
    %cst_12 = arith.constant dense<0.000000e+00> : vector<128x32xf32>
    %9 = tpu.matmul %7, %8, %cst_12 {dimension_numbers = #tpu.dot_dimension_numbers<[1], [0], [0], [1], [0, 0, 1, 1], [], []>} : vector<128x8xbf16>, vector<8x32xbf16>, vector<128x32xf32> -> vector<128x32xf32>
    %10 = arith.addf %6, %9 : vector<128x32xf32>
    %c0_13 = arith.constant 0 : index
    %c0_14 = arith.constant 0 : index
    %11 = vector.load %arg7[%c0_13, %c0_14] : memref<1x32xf32, #tpu.memory_space<vmem>>, vector<1x32xf32>
    %12 = vector.broadcast %11 : vector<1x32xf32> to vector<128x32xf32>
    %13 = arith.addf %10, %12 : vector<128x32xf32>
    %cst_15 = arith.constant 0.000000e+00 : f32
    %14 = vector.broadcast %cst_15 : f32 to vector<128x32xf32>
    %15 = arith.maximumf %13, %14 : vector<128x32xf32>
    %16 = arith.truncf %15 : vector<128x32xf32> to vector<128x32xbf16>
    %c0_16 = arith.constant 0 : index
    %c0_17 = arith.constant 0 : index
    %17 = vector.load %arg8[%c0_16, %c0_17] : memref<32x32xbf16, #tpu.memory_space<vmem>>, vector<32x32xbf16>
    %cst_18 = arith.constant dense<0.000000e+00> : vector<128x32xf32>
    %18 = tpu.matmul %16, %17, %cst_18 {dimension_numbers = #tpu.dot_dimension_numbers<[1], [0], [0], [1], [0, 0, 1, 1], [], []>} : vector<128x32xbf16>, vector<32x32xbf16>, vector<128x32xf32> -> vector<128x32xf32>
    %c0_19 = arith.constant 0 : index
    %c0_20 = arith.constant 0 : index
    %19 = vector.load %arg9[%c0_19, %c0_20] : memref<1x32xf32, #tpu.memory_space<vmem>>, vector<1x32xf32>
    %20 = vector.broadcast %19 : vector<1x32xf32> to vector<128x32xf32>
    %21 = arith.addf %18, %20 : vector<128x32xf32>
    %cst_21 = arith.constant 0.000000e+00 : f32
    %22 = vector.broadcast %cst_21 : f32 to vector<128x32xf32>
    %23 = arith.maximumf %21, %22 : vector<128x32xf32>
    %24 = arith.truncf %23 : vector<128x32xf32> to vector<128x32xbf16>
    %c0_22 = arith.constant 0 : index
    %c0_23 = arith.constant 0 : index
    %25 = vector.load %arg10[%c0_22, %c0_23] : memref<32x32xbf16, #tpu.memory_space<vmem>>, vector<32x32xbf16>
    %cst_24 = arith.constant dense<0.000000e+00> : vector<128x32xf32>
    %26 = tpu.matmul %24, %25, %cst_24 {dimension_numbers = #tpu.dot_dimension_numbers<[1], [0], [0], [1], [0, 0, 1, 1], [], []>} : vector<128x32xbf16>, vector<32x32xbf16>, vector<128x32xf32> -> vector<128x32xf32>
    %c0_25 = arith.constant 0 : index
    %c0_26 = arith.constant 0 : index
    %27 = vector.load %arg11[%c0_25, %c0_26] : memref<1x32xf32, #tpu.memory_space<vmem>>, vector<1x32xf32>
    %28 = vector.broadcast %27 : vector<1x32xf32> to vector<128x32xf32>
    %29 = arith.addf %26, %28 : vector<128x32xf32>
    %cst_27 = arith.constant 0.000000e+00 : f32
    %30 = vector.broadcast %cst_27 : f32 to vector<128x32xf32>
    %31 = arith.maximumf %29, %30 : vector<128x32xf32>
    %c0_28 = arith.constant 0 : index
    %c0_29 = arith.constant 0 : index
    %32 = vector.load %arg12[%c0_28, %c0_29] : memref<1x32xbf16, #tpu.memory_space<vmem>>, vector<1x32xbf16>
    %33 = arith.truncf %31 : vector<128x32xf32> to vector<128x32xbf16>
    %34 = tpu.transpose %33, [1, 0] : vector<128x32xbf16> -> vector<32x128xbf16>
    %cst_30 = arith.constant dense<0.000000e+00> : vector<1x128xf32>
    %35 = tpu.matmul %32, %34, %cst_30 {dimension_numbers = #tpu.dot_dimension_numbers<[1], [0], [0], [1], [0, 0, 1, 1], [], []>} : vector<1x32xbf16>, vector<32x128xbf16>, vector<1x128xf32> -> vector<1x128xf32>
    %c0_31 = arith.constant 0 : index
    %c0_32 = arith.constant 0 : index
    %36 = memref.load %arg13[%c0_31, %c0_32] : memref<1x1xf32, #tpu.memory_space<smem>>
    %37 = vector.broadcast %36 : f32 to vector<1x128xf32>
    %38 = arith.addf %35, %37 : vector<1x128xf32>
    %39 = arith.negf %38 : vector<1x128xf32>
    %40 = math.exp %39 : vector<1x128xf32>
    %cst_33 = arith.constant 1.000000e+00 : f32
    %41 = vector.broadcast %cst_33 : f32 to vector<1x128xf32>
    %42 = arith.addf %41, %40 : vector<1x128xf32>
    %43 = arith.divf %41, %42 : vector<1x128xf32>
    %c0_34 = arith.constant 0 : index
    %c0_35 = arith.constant 0 : index
    %44 = vector.load %arg14[%c0_34, %c0_35] : memref<1x128xf32, #tpu.memory_space<vmem>>, vector<1x128xf32>
    tpu.vector_store %arg14[%c0_34, %c0_35], %43 {strides = array<i32>} : memref<1x128xf32, #tpu.memory_space<vmem>>, vector<1x128xf32>,
    return
  }
  func.func @transform_0(%arg0: i32) -> (i32, i32) {
    %c0_i32 = arith.constant 0 : i32
    %c0_i32_0 = arith.constant 0 : i32
    return %arg0, %c0_i32 : i32, i32
  }
  func.func @transform_1(%arg0: i32) -> (i32, i32) {
    %c0_i32 = arith.constant 0 : i32
    %c0_i32_0 = arith.constant 0 : i32
    return %arg0, %c0_i32 : i32, i32
  }
  func.func @transform_2(%arg0: i32) -> (i32, i32) {
    %c0_i32 = arith.constant 0 : i32
    %c0_i32_0 = arith.constant 0 : i32
    return %arg0, %c0_i32 : i32, i32
  }
  func.func @transform_3(%arg0: i32) -> (i32, i32) {
    %c0_i32 = arith.constant 0 : i32
    %c0_i32_0 = arith.constant 0 : i32
    %c0_i32_1 = arith.constant 0 : i32
    return %c0_i32, %c0_i32_0 : i32, i32
  }
  func.func @transform_4(%arg0: i32) -> (i32, i32) {
    %c0_i32 = arith.constant 0 : i32
    %c0_i32_0 = arith.constant 0 : i32
    %c0_i32_1 = arith.constant 0 : i32
    return %c0_i32, %c0_i32_0 : i32, i32
  }
  func.func @transform_5(%arg0: i32) -> (i32, i32) {
    %c0_i32 = arith.constant 0 : i32
    %c0_i32_0 = arith.constant 0 : i32
    %c0_i32_1 = arith.constant 0 : i32
    return %c0_i32, %c0_i32_0 : i32, i32
  }
  func.func @transform_6(%arg0: i32) -> (i32, i32) {
    %c0_i32 = arith.constant 0 : i32
    %c0_i32_0 = arith.constant 0 : i32
    %c0_i32_1 = arith.constant 0 : i32
    return %c0_i32, %c0_i32_0 : i32, i32
  }
  func.func @transform_7(%arg0: i32) -> (i32, i32) {
    %c0_i32 = arith.constant 0 : i32
    %c0_i32_0 = arith.constant 0 : i32
    %c0_i32_1 = arith.constant 0 : i32
    return %c0_i32, %c0_i32_0 : i32, i32
  }
  func.func @transform_8(%arg0: i32) -> (i32, i32) {
    %c0_i32 = arith.constant 0 : i32
    %c0_i32_0 = arith.constant 0 : i32
    %c0_i32_1 = arith.constant 0 : i32
    return %c0_i32, %c0_i32_0 : i32, i32
  }
  func.func @transform_9(%arg0: i32) -> (i32, i32) {
    %c0_i32 = arith.constant 0 : i32
    %c0_i32_0 = arith.constant 0 : i32
    %c0_i32_1 = arith.constant 0 : i32
    return %c0_i32, %c0_i32_0 : i32, i32
  }
  func.func @transform_10(%arg0: i32) -> (i32, i32) {
    %c0_i32 = arith.constant 0 : i32
    %c0_i32_0 = arith.constant 0 : i32
    %c0_i32_1 = arith.constant 0 : i32
    return %c0_i32, %c0_i32_0 : i32, i32
  }
  func.func @transform_11(%arg0: i32) -> (i32, i32) {
    %c0_i32 = arith.constant 0 : i32
    %c0_i32_0 = arith.constant 0 : i32
    %c0_i32_1 = arith.constant 0 : i32
    return %c0_i32, %c0_i32_0 : i32, i32
  }
  func.func @transform_12(%arg0: i32) -> (i32, i32) {
    %c0_i32 = arith.constant 0 : i32
    %c0_i32_0 = arith.constant 0 : i32
    %c0_i32_1 = arith.constant 0 : i32
    return %c0_i32, %c0_i32_0 : i32, i32
  }
  func.func @transform_13(%arg0: i32) -> (i32, i32) {
    %c0_i32 = arith.constant 0 : i32
    %c0_i32_0 = arith.constant 0 : i32
    return %c0_i32, %arg0 : i32, i32
  }
}

</mosaic_0001>

<llo_original>
// kernel: tpu_custom_call.1
$region0: #{tpu_custom_call.1}
  #allocation0 [shape = 'u32[]', space=smem, size = 0x4, offset = 0x4, fixed_abs, tag = 'smem constant byte address 0x4 - core index']
  #allocation1 [shape = 'u32[144,128]{1,0:T(1,128)}', space=vmem, size = 0x12000, scoped, tag = 'internal scratch']
  #allocation2 [shape = 'f32[1,1]{1,0:T(1,128)S(6)}', space=smem, size = 0x200, scoped, tag = 'scoped memory for tpu_custom_call.1']
  %s0 = inlined_call_operand.vmem [shape: bf16[128,16], index: 0, kind: input, shape index: {}]
  %s1 = inlined_call_operand.vmem [shape: bf16[128,8], index: 1, kind: input, shape index: {}]
  %s2 = inlined_call_operand.vmem [shape: bf16[128,8], index: 2, kind: input, shape index: {}]
  %s3 = inlined_call_operand.vmem [shape: bf16[16,32], index: 3, kind: input, shape index: {}]
  %s4 = inlined_call_operand.vmem [shape: bf16[8,32], index: 4, kind: input, shape index: {}]
  %s5 = inlined_call_operand.vmem [shape: bf16[8,32], index: 5, kind: input, shape index: {}]
  %s6 = inlined_call_operand.vmem [shape: f32[1,32], index: 6, kind: input, shape index: {}]
  %s7 = inlined_call_operand.vmem [shape: bf16[32,32], index: 7, kind: input, shape index: {}]
  %s8 = inlined_call_operand.vmem [shape: f32[1,32], index: 8, kind: input, shape index: {}]
  %s9 = inlined_call_operand.vmem [shape: bf16[32,32], index: 9, kind: input, shape index: {}]
  %s10 = inlined_call_operand.vmem [shape: f32[1,32], index: 10, kind: input, shape index: {}]
  %s11 = inlined_call_operand.vmem [shape: bf16[1,32], index: 11, kind: input, shape index: {}]
  %s12 = inlined_call_operand.<no memory space> [shape: f32[1,1], index: 12, kind: input, shape index: {}]
  %s13 = inlined_call_operand.hbm [shape: f32[1,128], index: 13, kind: output, shape index: {}]
  %s14 = sld [smem:[#allocation0]]
  $region62: #{tpu_custom_call.1} parent=0
    _
  %s16 = ssub.s32 1, %s14
  %s17 = scalar_select 0, %s16, %s14
  %18 = sst [smem:[#allocation2]] %s12
  $region1: #{tpu_custom_call.1} parent=0
    #allocation3 [shape = 'u8[512]{0}', space=vmem, size = 0x400, scoped, tag = 'output window, operand 0, single buffered']
    #allocation4 [shape = 's32[1]{0}', space=sflag, size = 0x4, scoped, tag = 'scoped memory for tpu_custom_call.1']
    %19 = vsyncpa [#allocation4], 0
    // Predicated region
    $region2: #{tpu_custom_call.1} parent=1 // pred_check
      _
    $region3: #{tpu_custom_call.1} parent=1 // pred_check_branch
      %21 = sbr.rel (0) target = $region5
    $region4: #{tpu_custom_call.1} parent=1 // pred_region
      _
    $region5: #{tpu_custom_call.1} parent=1 // pred_fallthru
      _
    // Predicated region
    $region6: #{tpu_custom_call.1} parent=1 // pred_check
      _
    $region7: #{tpu_custom_call.1} parent=1 // pred_check_branch
      %23 = sbr.rel (0) target = $region9
    $region8: #{tpu_custom_call.1} parent=1 // pred_region
      _
    $region9: #{tpu_custom_call.1} parent=1 // pred_fallthru
      _
    // Predicated region
    $region10: #{tpu_custom_call.1} parent=1 // pred_check
      _
    $region11: #{tpu_custom_call.1} parent=1 // pred_check_branch
      %25 = sbr.rel (0) target = $region13
    $region12: #{tpu_custom_call.1} parent=1 // pred_region
      _
    $region13: #{tpu_custom_call.1} parent=1 // pred_fallthru
      _
    // Predicated region
    $region14: #{tpu_custom_call.1} parent=1 // pred_check
      _
    $region15: #{tpu_custom_call.1} parent=1 // pred_check_branch
      %27 = sbr.rel (0) target = $region17
    $region16: #{tpu_custom_call.1} parent=1 // pred_region
      _
    $region17: #{tpu_custom_call.1} parent=1 // pred_fallthru
      _
    // Predicated region
    $region18: #{tpu_custom_call.1} parent=1 // pred_check
      _
    $region19: #{tpu_custom_call.1} parent=1 // pred_check_branch
      %29 = sbr.rel (0) target = $region21
    $region20: #{tpu_custom_call.1} parent=1 // pred_region
      _
    $region21: #{tpu_custom_call.1} parent=1 // pred_fallthru
      _
    // Predicated region
    $region22: #{tpu_custom_call.1} parent=1 // pred_check
      _
    $region23: #{tpu_custom_call.1} parent=1 // pred_check_branch
      %31 = sbr.rel (0) target = $region25
    $region24: #{tpu_custom_call.1} parent=1 // pred_region
      _
    $region25: #{tpu_custom_call.1} parent=1 // pred_fallthru
      _
    // Predicated region
    $region26: #{tpu_custom_call.1} parent=1 // pred_check
      _
    $region27: #{tpu_custom_call.1} parent=1 // pred_check_branch
      %33 = sbr.rel (0) target = $region29
    $region28: #{tpu_custom_call.1} parent=1 // pred_region
      _
    $region29: #{tpu_custom_call.1} parent=1 // pred_fallthru
      _
    // Predicated region
    $region30: #{tpu_custom_call.1} parent=1 // pred_check
      _
    $region31: #{tpu_custom_call.1} parent=1 // pred_check_branch
      %35 = sbr.rel (0) target = $region33
    $region32: #{tpu_custom_call.1} parent=1 // pred_region
      _
    $region33: #{tpu_custom_call.1} parent=1 // pred_fallthru
      _
    // Predicated region
    $region34: #{tpu_custom_call.1} parent=1 // pred_check
      _
    $region35: #{tpu_custom_call.1} parent=1 // pred_check_branch
      %37 = sbr.rel (0) target = $region37
    $region36: #{tpu_custom_call.1} parent=1 // pred_region
      _
    $region37: #{tpu_custom_call.1} parent=1 // pred_fallthru
      _
    // Predicated region
    $region38: #{tpu_custom_call.1} parent=1 // pred_check
      _
    $region39: #{tpu_custom_call.1} parent=1 // pred_check_branch
      %39 = sbr.rel (0) target = $region41
    $region40: #{tpu_custom_call.1} parent=1 // pred_region
      _
    $region41: #{tpu_custom_call.1} parent=1 // pred_fallthru
      _
    // Predicated region
    $region42: #{tpu_custom_call.1} parent=1 // pred_check
      _
    $region43: #{tpu_custom_call.1} parent=1 // pred_check_branch
      %41 = sbr.rel (0) target = $region45
    $region44: #{tpu_custom_call.1} parent=1 // pred_region
      _
    $region45: #{tpu_custom_call.1} parent=1 // pred_fallthru
      _
    // Predicated region
    $region46: #{tpu_custom_call.1} parent=1 // pred_check
      _
    $region47: #{tpu_custom_call.1} parent=1 // pred_check_branch
      %43 = sbr.rel (0) target = $region49
    $region48: #{tpu_custom_call.1} parent=1 // pred_region
      _
    $region49: #{tpu_custom_call.1} parent=1 // pred_fallthru
      _
    // Predicated region
    $region50: #{tpu_custom_call.1} parent=1 // pred_check
      _
    $region51: #{tpu_custom_call.1} parent=1 // pred_check_branch
      %45 = sbr.rel (0) target = $region53
    $region52: #{tpu_custom_call.1} parent=1 // pred_region
      _
    $region53: #{tpu_custom_call.1} parent=1 // pred_fallthru
      _
    %v47 = vld [vmem:[%s0] sm:$0xf]
    %v48 = vld [vmem:[%s0 + $0x4] sm:$0xf]
    %v49 = vld [vmem:[%s0 + $0x8] sm:$0xf]
    %v50 = vld [vmem:[%s0 + $0xc] sm:$0xf]
    %v51 = vld [vmem:[%s0 + $0x10] sm:$0xf]
    %v52 = vld [vmem:[%s0 + $0x14] sm:$0xf]
    %v53 = vld [vmem:[%s0 + $0x18] sm:$0xf]
    %v54 = vld [vmem:[%s0 + $0x1c] sm:$0xf]
    %v55 = vld [vmem:[%s0 + $0x20] sm:$0xf]
    %v56 = vld [vmem:[%s0 + $0x24] sm:$0xf]
    %v57 = vld [vmem:[%s0 + $0x28] sm:$0xf]
    %v58 = vld [vmem:[%s0 + $0x2c] sm:$0xf]
    %v59 = vld [vmem:[%s0 + $0x30] sm:$0xf]
    %v60 = vld [vmem:[%s0 + $0x34] sm:$0xf]
    %v61 = vld [vmem:[%s0 + $0x38] sm:$0xf]
    %v62 = vld [vmem:[%s0 + $0x3c] sm:$0xf]
    %v63 = vld [vmem:[%s3] sm:$0xf]
    %v64 = vld [vmem:[%s3 + $0x4] sm:$0xf]
    %v65 = vld [vmem:[%s1] sm:$0xf]
    %v66 = vld [vmem:[%s1 + $0x4] sm:$0xf]
    %v67 = vld [vmem:[%s1 + $0x8] sm:$0xf]
    %v68 = vld [vmem:[%s1 + $0xc] sm:$0xf]
    %v69 = vld [vmem:[%s1 + $0x10] sm:$0xf]
    %v70 = vld [vmem:[%s1 + $0x14] sm:$0xf]
    %v71 = vld [vmem:[%s1 + $0x18] sm:$0xf]
    %v72 = vld [vmem:[%s1 + $0x1c] sm:$0xf]
    %v73 = vld [vmem:[%s1 + $0x20] sm:$0xf]
    %v74 = vld [vmem:[%s1 + $0x24] sm:$0xf]
    %v75 = vld [vmem:[%s1 + $0x28] sm:$0xf]
    %v76 = vld [vmem:[%s1 + $0x2c] sm:$0xf]
    %v77 = vld [vmem:[%s1 + $0x30] sm:$0xf]
    %v78 = vld [vmem:[%s1 + $0x34] sm:$0xf]
    %v79 = vld [vmem:[%s1 + $0x38] sm:$0xf]
    %v80 = vld [vmem:[%s1 + $0x3c] sm:$0xf]
    %v81 = vld [vmem:[%s4] sm:$0xf]
    %v98 = vunpack.c.l.b16 %v65
    %v99 = vunpack.c.l.b16 %v66
    %v100 = vunpack.c.l.b16 %v67
    %v101 = vunpack.c.l.b16 %v68
    %v102 = vunpack.c.l.b16 %v69
    %v103 = vunpack.c.l.b16 %v70
    %v104 = vunpack.c.l.b16 %v71
    %v105 = vunpack.c.l.b16 %v72
    %v106 = vunpack.c.l.b16 %v73
    %v107 = vunpack.c.l.b16 %v74
    %v108 = vunpack.c.l.b16 %v75
    %v109 = vunpack.c.l.b16 %v76
    %v110 = vunpack.c.l.b16 %v77
    %v111 = vunpack.c.l.b16 %v78
    %v112 = vunpack.c.l.b16 %v79
    %v113 = vunpack.c.l.b16 %v80
    %v114 = vpack.c.b16 %v99, %v98
    %v115 = vpack.c.b16 %v101, %v100
    %v116 = vpack.c.b16 %v103, %v102
    %v117 = vpack.c.b16 %v105, %v104
    %v118 = vpack.c.b16 %v107, %v106
    %v119 = vpack.c.b16 %v109, %v108
    %v120 = vpack.c.b16 %v111, %v110
    %v121 = vpack.c.b16 %v113, %v112
    %vm122 = vcmask 64512
    %v124 = vsel %vm122, %v114, 0
    %v127 = vsel %vm122, %v115, 0
    %v130 = vsel %vm122, %v116, 0
    %v133 = vsel %vm122, %v117, 0
    %v136 = vsel %vm122, %v118, 0
    %v139 = vsel %vm122, %v119, 0
    %v142 = vsel %vm122, %v120, 0
    %v145 = vsel %vm122, %v121, 0
    %vm147 = vcmask 1043456
    %v149 = vsel %vm147, %v81, 0
    %151 = vmatprep.subr.bf16.mxu0 0
    %152 = vmatpush1.bf16.msra.mxu0 %v149
    %153 = vmatprep.subr.bf16.mxu0 0
    %154 = vmatpush1.bf16.msra.mxu0 0
    %155 = vmatprep.subr.bf16.mxu0 0
    %156 = vmatpush1.bf16.msra.mxu0 0
    %157 = vmatprep.subr.bf16.mxu0 0
    %158 = vmatpush1.bf16.msra.mxu0 0
    %159 = vmatprep.subr.bf16.mxu0 0
    %160 = vmatpush1.bf16.msra.mxu0 0
    %161 = vmatprep.subr.bf16.mxu0 0
    %162 = vmatpush1.bf16.msra.mxu0 0
    %163 = vmatprep.subr.bf16.mxu0 0
    %164 = vmatpush1.bf16.msra.mxu0 0
    %165 = vmatprep.subr.bf16.mxu0 0
    %166 = vmatpush1.bf16.msra.mxu0 0
    %167 = vmatprep.subr.bf16.mxu0 0
    %168 = vmatpush1.bf16.msra.mxu0 0
    %169 = vmatprep.subr.bf16.mxu0 0
    %170 = vmatpush1.bf16.msra.mxu0 0
    %171 = vmatprep.subr.bf16.mxu0 0
    %172 = vmatpush1.bf16.msra.mxu0 0
    %173 = vmatprep.subr.bf16.mxu0 0
    %174 = vmatpush1.bf16.msra.mxu0 0
    %175 = vmatprep.subr.bf16.mxu0 0
    %176 = vmatpush1.bf16.msra.mxu0 0
    %177 = vmatprep.subr.bf16.mxu0 0
    %178 = vmatpush1.bf16.msra.mxu0 0
    %179 = vmatprep.subr.bf16.mxu0 0
    %180 = vmatpush1.bf16.msra.mxu0 0
    %181 = vmatprep.subr.bf16.mxu0 0
    %182 = vmatpush1.bf16.msra.mxu0 0
    %183 = vmatprep.mubr.bf16.mxu0 0
    %184 = vmatmul.mubr.bf16.gmra.mrb[0].mxu0 %v124
    %v185 = vpop.f32.mrb[0].mxu0
    %v186 = vadd.f32 0.0, %v185
    %v187 = vpop.f32.mrb[0].mxu0
    %v188 = vpop.f32.mrb[0].mxu0
    %v189 = vadd.f32 0.0, %v188
    %v190 = vpop.f32.mrb[0].mxu0
    %191 = vmatprep.mubr.bf16.mxu0 0
    %192 = vmatmul.mubr.bf16.gmra.mrb[0].mxu0 %v127
    %v193 = vpop.f32.mrb[0].mxu0
    %v194 = vadd.f32 0.0, %v193
    %v195 = vpop.f32.mrb[0].mxu0
    %v196 = vpop.f32.mrb[0].mxu0
    %v197 = vadd.f32 0.0, %v196
    %v198 = vpop.f32.mrb[0].mxu0
    %199 = vmatprep.mubr.bf16.mxu0 0
    %200 = vmatmul.mubr.bf16.gmra.mrb[0].mxu0 %v130
    %v201 = vpop.f32.mrb[0].mxu0
    %v202 = vadd.f32 0.0, %v201
    %v203 = vpop.f32.mrb[0].mxu0
    %v204 = vpop.f32.mrb[0].mxu0
    %v205 = vadd.f32 0.0, %v204
    %v206 = vpop.f32.mrb[0].mxu0
    %207 = vmatprep.mubr.bf16.mxu0 0
    %208 = vmatmul.mubr.bf16.gmra.mrb[0].mxu0 %v133
    %v209 = vpop.f32.mrb[0].mxu0
    %v210 = vadd.f32 0.0, %v209
    %v211 = vpop.f32.mrb[0].mxu0
    %v212 = vpop.f32.mrb[0].mxu0
    %v213 = vadd.f32 0.0, %v212
    %v214 = vpop.f32.mrb[0].mxu0
    %215 = vmatprep.mubr.bf16.mxu0 0
    %216 = vmatmul.mubr.bf16.gmra.mrb[0].mxu0 %v136
    %v217 = vpop.f32.mrb[0].mxu0
    %v218 = vadd.f32 0.0, %v217
    %v219 = vpop.f32.mrb[0].mxu0
    %v220 = vpop.f32.mrb[0].mxu0
    %v221 = vadd.f32 0.0, %v220
    %v222 = vpop.f32.mrb[0].mxu0
    %223 = vmatprep.mubr.bf16.mxu0 0
    %224 = vmatmul.mubr.bf16.gmra.mrb[0].mxu0 %v139
    %v225 = vpop.f32.mrb[0].mxu0
    %v226 = vadd.f32 0.0, %v225
    %v227 = vpop.f32.mrb[0].mxu0
    %v228 = vpop.f32.mrb[0].mxu0
    %v229 = vadd.f32 0.0, %v228
    %v230 = vpop.f32.mrb[0].mxu0
    %231 = vmatprep.mubr.bf16.mxu0 0
    %232 = vmatmul.mubr.bf16.gmra.mrb[0].mxu0 %v142
    %v233 = vpop.f32.mrb[0].mxu0
    %v234 = vadd.f32 0.0, %v233
    %v235 = vpop.f32.mrb[0].mxu0
    %v236 = vpop.f32.mrb[0].mxu0
    %v237 = vadd.f32 0.0, %v236
    %v238 = vpop.f32.mrb[0].mxu0
    %239 = vmatprep.mubr.bf16.mxu0 0
    %240 = vmatmul.mubr.bf16.gmra.mrb[0].mxu0 %v145
    %v241 = vpop.f32.mrb[0].mxu0
    %v242 = vadd.f32 0.0, %v241
    %v243 = vpop.f32.mrb[0].mxu0
    %v244 = vpop.f32.mrb[0].mxu0
    %v245 = vadd.f32 0.0, %v244
    %v246 = vpop.f32.mrb[0].mxu0
    %247 = vdwg.mxu0
    %v264 = vunpack.c.l.b16 %v47
    %v265 = vunpack.c.l.b16 %v48
    %v266 = vunpack.c.l.b16 %v49
    %v267 = vunpack.c.l.b16 %v50
    %v268 = vunpack.c.l.b16 %v51
    %v269 = vunpack.c.l.b16 %v52
    %v270 = vunpack.c.l.b16 %v53
    %v271 = vunpack.c.l.b16 %v54
    %v272 = vunpack.c.l.b16 %v55
    %v273 = vunpack.c.l.b16 %v56
    %v274 = vunpack.c.l.b16 %v57
    %v275 = vunpack.c.l.b16 %v58
    %v276 = vunpack.c.l.b16 %v59
    %v277 = vunpack.c.l.b16 %v60
    %v278 = vunpack.c.l.b16 %v61
    %v279 = vunpack.c.l.b16 %v62
    %v280 = vpack.c.b16 %v265, %v264
    %v281 = vpack.c.b16 %v267, %v266
    %v282 = vpack.c.b16 %v269, %v268
    %v283 = vpack.c.b16 %v271, %v270
    %v284 = vpack.c.b16 %v273, %v272
    %v285 = vpack.c.b16 %v275, %v274
    %v286 = vpack.c.b16 %v277, %v276
    %v287 = vpack.c.b16 %v279, %v278
    %v290 = vunpack.c.l.b16 %v63
    %v291 = vunpack.c.l.b16 %v64
    %v292 = vpack.c.b16 %v291, %v290
    %vm294 = vcmask 130048
    %v296 = vsel %vm294, %v280, 0
    %v299 = vsel %vm294, %v281, 0
    %v302 = vsel %vm294, %v282, 0
    %v305 = vsel %vm294, %v283, 0
    %v308 = vsel %vm294, %v284, 0
    %v311 = vsel %vm294, %v285, 0
    %v314 = vsel %vm294, %v286, 0
    %v317 = vsel %vm294, %v287, 0
    %319 = vmatprep.subr.bf16.mxu0 0
    %320 = vmatpush1.bf16.msra.mxu0 %v292
    %321 = vmatprep.subr.bf16.mxu0 0
    %322 = vmatpush1.bf16.msra.mxu0 0
    %323 = vmatprep.subr.bf16.mxu0 0
    %324 = vmatpush1.bf16.msra.mxu0 0
    %325 = vmatprep.subr.bf16.mxu0 0
    %326 = vmatpush1.bf16.msra.mxu0 0
    %327 = vmatprep.subr.bf16.mxu0 0
    %328 = vmatpush1.bf16.msra.mxu0 0
    %329 = vmatprep.subr.bf16.mxu0 0
    %330 = vmatpush1.bf16.msra.mxu0 0
    %331 = vmatprep.subr.bf16.mxu0 0
    %332 = vmatpush1.bf16.msra.mxu0 0
    %333 = vmatprep.subr.bf16.mxu0 0
    %334 = vmatpush1.bf16.msra.mxu0 0
    %335 = vmatprep.subr.bf16.mxu0 0
    %336 = vmatpush1.bf16.msra.mxu0 0
    %337 = vmatprep.subr.bf16.mxu0 0
    %338 = vmatpush1.bf16.msra.mxu0 0
    %339 = vmatprep.subr.bf16.mxu0 0
    %340 = vmatpush1.bf16.msra.mxu0 0
    %341 = vmatprep.subr.bf16.mxu0 0
    %342 = vmatpush1.bf16.msra.mxu0 0
    %343 = vmatprep.subr.bf16.mxu0 0
    %344 = vmatpush1.bf16.msra.mxu0 0
    %345 = vmatprep.subr.bf16.mxu0 0
    %346 = vmatpush1.bf16.msra.mxu0 0
    %347 = vmatprep.subr.bf16.mxu0 0
    %348 = vmatpush1.bf16.msra.mxu0 0
    %349 = vmatprep.subr.bf16.mxu0 0
    %350 = vmatpush1.bf16.msra.mxu0 0
    %351 = vmatprep.mubr.bf16.mxu0 0
    %352 = vmatmul.mubr.bf16.gmra.mrb[0].mxu0 %v296
    %v353 = vpop.f32.mrb[0].mxu0
    %v354 = vadd.f32 %v186, %v353
    %v355 = vpop.f32.mrb[0].mxu0
    %v356 = vpop.f32.mrb[0].mxu0
    %v357 = vadd.f32 %v189, %v356
    %v358 = vpop.f32.mrb[0].mxu0
    %359 = vmatprep.mubr.bf16.mxu0 0
    %360 = vmatmul.mubr.bf16.gmra.mrb[0].mxu0 %v299
    %v361 = vpop.f32.mrb[0].mxu0
    %v362 = vadd.f32 %v194, %v361
    %v363 = vpop.f32.mrb[0].mxu0
    %v364 = vpop.f32.mrb[0].mxu0
    %v365 = vadd.f32 %v197, %v364
    %v366 = vpop.f32.mrb[0].mxu0
    %367 = vmatprep.mubr.bf16.mxu0 0
    %368 = vmatmul.mubr.bf16.gmra.mrb[0].mxu0 %v302
    %v369 = vpop.f32.mrb[0].mxu0
    %v370 = vadd.f32 %v202, %v369
    %v371 = vpop.f32.mrb[0].mxu0
    %v372 = vpop.f32.mrb[0].mxu0
    %v373 = vadd.f32 %v205, %v372
    %v374 = vpop.f32.mrb[0].mxu0
    %375 = vmatprep.mubr.bf16.mxu0 0
    %376 = vmatmul.mubr.bf16.gmra.mrb[0].mxu0 %v305
    %v377 = vpop.f32.mrb[0].mxu0
    %v378 = vadd.f32 %v210, %v377
    %v379 = vpop.f32.mrb[0].mxu0
    %v380 = vpop.f32.mrb[0].mxu0
    %v381 = vadd.f32 %v213, %v380
    %v382 = vpop.f32.mrb[0].mxu0
    %383 = vmatprep.mubr.bf16.mxu0 0
    %384 = vmatmul.mubr.bf16.gmra.mrb[0].mxu0 %v308
    %v385 = vpop.f32.mrb[0].mxu0
    %v386 = vadd.f32 %v218, %v385
    %v387 = vpop.f32.mrb[0].mxu0
    %v388 = vpop.f32.mrb[0].mxu0
    %v389 = vadd.f32 %v221, %v388
    %v390 = vpop.f32.mrb[0].mxu0
    %391 = vmatprep.mubr.bf16.mxu0 0
    %392 = vmatmul.mubr.bf16.gmra.mrb[0].mxu0 %v311
    %v393 = vpop.f32.mrb[0].mxu0
    %v394 = vadd.f32 %v226, %v393
    %v395 = vpop.f32.mrb[0].mxu0
    %v396 = vpop.f32.mrb[0].mxu0
    %v397 = vadd.f32 %v229, %v396
    %v398 = vpop.f32.mrb[0].mxu0
    %399 = vmatprep.mubr.bf16.mxu0 0
    %400 = vmatmul.mubr.bf16.gmra.mrb[0].mxu0 %v314
    %v401 = vpop.f32.mrb[0].mxu0
    %v402 = vadd.f32 %v234, %v401
    %v403 = vpop.f32.mrb[0].mxu0
    %v404 = vpop.f32.mrb[0].mxu0
    %v405 = vadd.f32 %v237, %v404
    %v406 = vpop.f32.mrb[0].mxu0
    %407 = vmatprep.mubr.bf16.mxu0 0
    %408 = vmatmul.mubr.bf16.gmra.mrb[0].mxu0 %v317
    %v409 = vpop.f32.mrb[0].mxu0
    %v410 = vadd.f32 %v242, %v409
    %v411 = vpop.f32.mrb[0].mxu0
    %v412 = vpop.f32.mrb[0].mxu0
    %v413 = vadd.f32 %v245, %v412
    %v414 = vpop.f32.mrb[0].mxu0
    %415 = vdwg.mxu0
    %v416 = vld [vmem:[%s2] sm:$0xf]
    %v417 = vld [vmem:[%s2 + $0x4] sm:$0xf]
    %v418 = vld [vmem:[%s2 + $0x8] sm:$0xf]
    %v419 = vld [vmem:[%s2 + $0xc] sm:$0xf]
    %v420 = vld [vmem:[%s2 + $0x10] sm:$0xf]
    %v421 = vld [vmem:[%s2 + $0x14] sm:$0xf]
    %v422 = vld [vmem:[%s2 + $0x18] sm:$0xf]
    %v423 = vld [vmem:[%s2 + $0x1c] sm:$0xf]
    %v424 = vld [vmem:[%s2 + $0x20] sm:$0xf]
    %v425 = vld [vmem:[%s2 + $0x24] sm:$0xf]
    %v426 = vld [vmem:[%s2 + $0x28] sm:$0xf]
    %v427 = vld [vmem:[%s2 + $0x2c] sm:$0xf]
    %v428 = vld [vmem:[%s2 + $0x30] sm:$0xf]
    %v429 = vld [vmem:[%s2 + $0x34] sm:$0xf]
    %v430 = vld [vmem:[%s2 + $0x38] sm:$0xf]
    %v431 = vld [vmem:[%s2 + $0x3c] sm:$0xf]
    %v432 = vld [vmem:[%s5] sm:$0xf]
    %v449 = vunpack.c.l.b16 %v416
    %v450 = vunpack.c.l.b16 %v417
    %v451 = vunpack.c.l.b16 %v418
    %v452 = vunpack.c.l.b16 %v419
    %v453 = vunpack.c.l.b16 %v420
    %v454 = vunpack.c.l.b16 %v421
    %v455 = vunpack.c.l.b16 %v422
    %v456 = vunpack.c.l.b16 %v423
    %v457 = vunpack.c.l.b16 %v424
    %v458 = vunpack.c.l.b16 %v425
    %v459 = vunpack.c.l.b16 %v426
    %v460 = vunpack.c.l.b16 %v427
    %v461 = vunpack.c.l.b16 %v428
    %v462 = vunpack.c.l.b16 %v429
    %v463 = vunpack.c.l.b16 %v430
    %v464 = vunpack.c.l.b16 %v431
    %v465 = vpack.c.b16 %v450, %v449
    %v466 = vpack.c.b16 %v452, %v451
    %v467 = vpack.c.b16 %v454, %v453
    %v468 = vpack.c.b16 %v456, %v455
    %v469 = vpack.c.b16 %v458, %v457
    %v470 = vpack.c.b16 %v460, %v459
    %v471 = vpack.c.b16 %v462, %v461
    %v472 = vpack.c.b16 %v464, %v463
    %v474 = vsel %vm122, %v465, 0
    %v477 = vsel %vm122, %v466, 0
    %v480 = vsel %vm122, %v467, 0
    %v483 = vsel %vm122, %v468, 0
    %v486 = vsel %vm122, %v469, 0
    %v489 = vsel %vm122, %v470, 0
    %v492 = vsel %vm122, %v471, 0
    %v495 = vsel %vm122, %v472, 0
    %v498 = vsel %vm147, %v432, 0
    %500 = vmatprep.subr.bf16.mxu0 0
    %501 = vmatpush1.bf16.msra.mxu0 %v498
    %502 = vmatprep.subr.bf16.mxu0 0
    %503 = vmatpush1.bf16.msra.mxu0 0
    %504 = vmatprep.subr.bf16.mxu0 0
    %505 = vmatpush1.bf16.msra.mxu0 0
    %506 = vmatprep.subr.bf16.mxu0 0
    %507 = vmatpush1.bf16.msra.mxu0 0
    %508 = vmatprep.subr.bf16.mxu0 0
    %509 = vmatpush1.bf16.msra.mxu0 0
    %510 = vmatprep.subr.bf16.mxu0 0
    %511 = vmatpush1.bf16.msra.mxu0 0
    %512 = vmatprep.subr.bf16.mxu0 0
    %513 = vmatpush1.bf16.msra.mxu0 0
    %514 = vmatprep.subr.bf16.mxu0 0
    %515 = vmatpush1.bf16.msra.mxu0 0
    %516 = vmatprep.subr.bf16.mxu0 0
    %517 = vmatpush1.bf16.msra.mxu0 0
    %518 = vmatprep.subr.bf16.mxu0 0
    %519 = vmatpush1.bf16.msra.mxu0 0
    %520 = vmatprep.subr.bf16.mxu0 0
    %521 = vmatpush1.bf16.msra.mxu0 0
    %522 = vmatprep.subr.bf16.mxu0 0
    %523 = vmatpush1.bf16.msra.mxu0 0
    %524 = vmatprep.subr.bf16.mxu0 0
    %525 = vmatpush1.bf16.msra.mxu0 0
    %526 = vmatprep.subr.bf16.mxu0 0
    %527 = vmatpush1.bf16.msra.mxu0 0
    %528 = vmatprep.subr.bf16.mxu0 0
    %529 = vmatpush1.bf16.msra.mxu0 0
    %530 = vmatprep.subr.bf16.mxu0 0
    %531 = vmatpush1.bf16.msra.mxu0 0
    %532 = vmatprep.mubr.bf16.mxu0 0
    %533 = vmatmul.mubr.bf16.gmra.mrb[0].mxu0 %v474
    %v534 = vpop.f32.mrb[0].mxu0
    %v535 = vadd.f32 0.0, %v534
    %v536 = vpop.f32.mrb[0].mxu0
    %v537 = vpop.f32.mrb[0].mxu0
    %v538 = vadd.f32 0.0, %v537
    %v539 = vpop.f32.mrb[0].mxu0
    %540 = vmatprep.mubr.bf16.mxu0 0
    %541 = vmatmul.mubr.bf16.gmra.mrb[0].mxu0 %v477
    %v542 = vpop.f32.mrb[0].mxu0
    %v543 = vadd.f32 0.0, %v542
    %v544 = vpop.f32.mrb[0].mxu0
    %v545 = vpop.f32.mrb[0].mxu0
    %v546 = vadd.f32 0.0, %v545
    %v547 = vpop.f32.mrb[0].mxu0
    %548 = vmatprep.mubr.bf16.mxu0 0
    %549 = vmatmul.mubr.bf16.gmra.mrb[0].mxu0 %v480
    %v550 = vpop.f32.mrb[0].mxu0
    %v551 = vadd.f32 0.0, %v550
    %v552 = vpop.f32.mrb[0].mxu0
    %v553 = vpop.f32.mrb[0].mxu0
    %v554 = vadd.f32 0.0, %v553
    %v555 = vpop.f32.mrb[0].mxu0
    %556 = vmatprep.mubr.bf16.mxu0 0
    %557 = vmatmul.mubr.bf16.gmra.mrb[0].mxu0 %v483
    %v558 = vpop.f32.mrb[0].mxu0
    %v559 = vadd.f32 0.0, %v558
    %v560 = vpop.f32.mrb[0].mxu0
    %v561 = vpop.f32.mrb[0].mxu0
    %v562 = vadd.f32 0.0, %v561
    %v563 = vpop.f32.mrb[0].mxu0
    %564 = vmatprep.mubr.bf16.mxu0 0
    %565 = vmatmul.mubr.bf16.gmra.mrb[0].mxu0 %v486
    %v566 = vpop.f32.mrb[0].mxu0
    %v567 = vadd.f32 0.0, %v566
    %v568 = vpop.f32.mrb[0].mxu0
    %v569 = vpop.f32.mrb[0].mxu0
    %v570 = vadd.f32 0.0, %v569
    %v571 = vpop.f32.mrb[0].mxu0
    %572 = vmatprep.mubr.bf16.mxu0 0
    %573 = vmatmul.mubr.bf16.gmra.mrb[0].mxu0 %v489
    %v574 = vpop.f32.mrb[0].mxu0
    %v575 = vadd.f32 0.0, %v574
    %v576 = vpop.f32.mrb[0].mxu0
    %v577 = vpop.f32.mrb[0].mxu0
    %v578 = vadd.f32 0.0, %v577
    %v579 = vpop.f32.mrb[0].mxu0
    %580 = vmatprep.mubr.bf16.mxu0 0
    %581 = vmatmul.mubr.bf16.gmra.mrb[0].mxu0 %v492
    %v582 = vpop.f32.mrb[0].mxu0
    %v583 = vadd.f32 0.0, %v582
    %v584 = vpop.f32.mrb[0].mxu0
    %v585 = vpop.f32.mrb[0].mxu0
    %v586 = vadd.f32 0.0, %v585
    %v587 = vpop.f32.mrb[0].mxu0
    %588 = vmatprep.mubr.bf16.mxu0 0
    %589 = vmatmul.mubr.bf16.gmra.mrb[0].mxu0 %v495
    %v590 = vpop.f32.mrb[0].mxu0
    %v591 = vadd.f32 0.0, %v590
    %v592 = vpop.f32.mrb[0].mxu0
    %v593 = vpop.f32.mrb[0].mxu0
    %v594 = vadd.f32 0.0, %v593
    %v595 = vpop.f32.mrb[0].mxu0
    %596 = vdwg.mxu0
    %v597 = vadd.f32 %v354, %v535
    %v598 = vadd.f32 %v357, %v538
    %v599 = vadd.f32 %v362, %v543
    %v600 = vadd.f32 %v365, %v546
    %v601 = vadd.f32 %v370, %v551
    %v602 = vadd.f32 %v373, %v554
    %v603 = vadd.f32 %v378, %v559
    %v604 = vadd.f32 %v381, %v562
    %v605 = vadd.f32 %v386, %v567
    %v606 = vadd.f32 %v389, %v570
    %v607 = vadd.f32 %v394, %v575
    %v608 = vadd.f32 %v397, %v578
    %v609 = vadd.f32 %v402, %v583
    %v610 = vadd.f32 %v405, %v586
    %v611 = vadd.f32 %v410, %v591
    %v612 = vadd.f32 %v413, %v594
    %v613 = vld [vmem:[%s6] sm:$0x1]
    %v615 = vlaneseq
    %v616 = vshrl.u32 %v615, 7
    %v617 = vsub.s32 0, %v616
    %v618 = vrot.slane %v613, %v617
    %v620 = vadd.f32 %v597, %v618
    %v621 = vadd.f32 %v598, %v618
    %v622 = vadd.f32 %v599, %v618
    %v623 = vadd.f32 %v600, %v618
    %v624 = vadd.f32 %v601, %v618
    %v625 = vadd.f32 %v602, %v618
    %v626 = vadd.f32 %v603, %v618
    %v627 = vadd.f32 %v604, %v618
    %v628 = vadd.f32 %v605, %v618
    %v629 = vadd.f32 %v606, %v618
    %v630 = vadd.f32 %v607, %v618
    %v631 = vadd.f32 %v608, %v618
    %v632 = vadd.f32 %v609, %v618
    %v633 = vadd.f32 %v610, %v618
    %v634 = vadd.f32 %v611, %v618
    %v635 = vadd.f32 %v612, %v618
    %v636 = vmax.f32 %v620, 0.0
    %v637 = vmax.f32 %v621, 0.0
    %v638 = vmax.f32 %v622, 0.0
    %v639 = vmax.f32 %v623, 0.0
    %v640 = vmax.f32 %v624, 0.0
    %v641 = vmax.f32 %v625, 0.0
    %v642 = vmax.f32 %v626, 0.0
    %v643 = vmax.f32 %v627, 0.0
    %v644 = vmax.f32 %v628, 0.0
    %v645 = vmax.f32 %v629, 0.0
    %v646 = vmax.f32 %v630, 0.0
    %v647 = vmax.f32 %v631, 0.0
    %v648 = vmax.f32 %v632, 0.0
    %v649 = vmax.f32 %v633, 0.0
    %v650 = vmax.f32 %v634, 0.0
    %v651 = vmax.f32 %v635, 0.0
    %v652 = vpack.c.bf16 %v637, %v636
    %v653 = vpack.c.bf16 %v639, %v638
    %v654 = vpack.c.bf16 %v641, %v640
    %v655 = vpack.c.bf16 %v643, %v642
    %v656 = vpack.c.bf16 %v645, %v644
    %v657 = vpack.c.bf16 %v647, %v646
    %v658 = vpack.c.bf16 %v649, %v648
    %v659 = vpack.c.bf16 %v651, %v650
    %v660 = vld [vmem:[%s7] sm:$0xf]
    %v661 = vld [vmem:[%s7 + $0x4] sm:$0xf]
    %v662 = vld [vmem:[%s7 + $0x8] sm:$0xf]
    %v663 = vld [vmem:[%s7 + $0xc] sm:$0xf]
    %v664 = vld [vmem:[%s8] sm:$0x1]
    %v666 = vlaneseq
    %v667 = vshrl.u32 %v666, 7
    %v668 = vsub.s32 0, %v667
    %v669 = vrot.slane %v664, %v668
    %v675 = vunpack.c.l.b16 %v660
    %v676 = vunpack.c.l.b16 %v661
    %v677 = vunpack.c.l.b16 %v662
    %v678 = vunpack.c.l.b16 %v663
    %v679 = vpack.c.b16 %v676, %v675
    %v680 = vpack.c.b16 %v678, %v677
    %vm683 = vcmask 261120
    %v685 = vsel %vm683, %v652, 0
    %v688 = vsel %vm683, %v653, 0
    %v691 = vsel %vm683, %v654, 0
    %v694 = vsel %vm683, %v655, 0
    %v697 = vsel %vm683, %v656, 0
    %v700 = vsel %vm683, %v657, 0
    %v703 = vsel %vm683, %v658, 0
    %v706 = vsel %vm683, %v659, 0
    %708 = vmatprep.subr.bf16.mxu0 0
    %709 = vmatpush1.bf16.msra.mxu0 %v679
    %710 = vmatprep.subr.bf16.mxu0 0
    %711 = vmatpush1.bf16.msra.mxu0 %v680
    %712 = vmatprep.subr.bf16.mxu0 0
    %713 = vmatpush1.bf16.msra.mxu0 0
    %714 = vmatprep.subr.bf16.mxu0 0
    %715 = vmatpush1.bf16.msra.mxu0 0
    %716 = vmatprep.subr.bf16.mxu0 0
    %717 = vmatpush1.bf16.msra.mxu0 0
    %718 = vmatprep.subr.bf16.mxu0 0
    %719 = vmatpush1.bf16.msra.mxu0 0
    %720 = vmatprep.subr.bf16.mxu0 0
    %721 = vmatpush1.bf16.msra.mxu0 0
    %722 = vmatprep.subr.bf16.mxu0 0
    %723 = vmatpush1.bf16.msra.mxu0 0
    %724 = vmatprep.subr.bf16.mxu0 0
    %725 = vmatpush1.bf16.msra.mxu0 0
    %726 = vmatprep.subr.bf16.mxu0 0
    %727 = vmatpush1.bf16.msra.mxu0 0
    %728 = vmatprep.subr.bf16.mxu0 0
    %729 = vmatpush1.bf16.msra.mxu0 0
    %730 = vmatprep.subr.bf16.mxu0 0
    %731 = vmatpush1.bf16.msra.mxu0 0
    %732 = vmatprep.subr.bf16.mxu0 0
    %733 = vmatpush1.bf16.msra.mxu0 0
    %734 = vmatprep.subr.bf16.mxu0 0
    %735 = vmatpush1.bf16.msra.mxu0 0
    %736 = vmatprep.subr.bf16.mxu0 0
    %737 = vmatpush1.bf16.msra.mxu0 0
    %738 = vmatprep.subr.bf16.mxu0 0
    %739 = vmatpush1.bf16.msra.mxu0 0
    %740 = vmatprep.mubr.bf16.mxu0 0
    %741 = vmatmul.mubr.bf16.gmra.mrb[0].mxu0 %v685
    %v742 = vpop.f32.mrb[0].mxu0
    %v743 = vadd.f32 %v669, %v742
    %v744 = vpop.f32.mrb[0].mxu0
    %v745 = vpop.f32.mrb[0].mxu0
    %v746 = vadd.f32 %v669, %v745
    %v747 = vpop.f32.mrb[0].mxu0
    %748 = vmatprep.mubr.bf16.mxu0 0
    %749 = vmatmul.mubr.bf16.gmra.mrb[0].mxu0 %v688
    %v750 = vpop.f32.mrb[0].mxu0
    %v751 = vadd.f32 %v669, %v750
    %v752 = vpop.f32.mrb[0].mxu0
    %v753 = vpop.f32.mrb[0].mxu0
    %v754 = vadd.f32 %v669, %v753
    %v755 = vpop.f32.mrb[0].mxu0
    %756 = vmatprep.mubr.bf16.mxu0 0
    %757 = vmatmul.mubr.bf16.gmra.mrb[0].mxu0 %v691
    %v758 = vpop.f32.mrb[0].mxu0
    %v759 = vadd.f32 %v669, %v758
    %v760 = vpop.f32.mrb[0].mxu0
    %v761 = vpop.f32.mrb[0].mxu0
    %v762 = vadd.f32 %v669, %v761
    %v763 = vpop.f32.mrb[0].mxu0
    %764 = vmatprep.mubr.bf16.mxu0 0
    %765 = vmatmul.mubr.bf16.gmra.mrb[0].mxu0 %v694
    %v766 = vpop.f32.mrb[0].mxu0
    %v767 = vadd.f32 %v669, %v766
    %v768 = vpop.f32.mrb[0].mxu0
    %v769 = vpop.f32.mrb[0].mxu0
    %v770 = vadd.f32 %v669, %v769
    %v771 = vpop.f32.mrb[0].mxu0
    %772 = vmatprep.mubr.bf16.mxu0 0
    %773 = vmatmul.mubr.bf16.gmra.mrb[0].mxu0 %v697
    %v774 = vpop.f32.mrb[0].mxu0
    %v775 = vadd.f32 %v669, %v774
    %v776 = vpop.f32.mrb[0].mxu0
    %v777 = vpop.f32.mrb[0].mxu0
    %v778 = vadd.f32 %v669, %v777
    %v779 = vpop.f32.mrb[0].mxu0
    %780 = vmatprep.mubr.bf16.mxu0 0
    %781 = vmatmul.mubr.bf16.gmra.mrb[0].mxu0 %v700
    %v782 = vpop.f32.mrb[0].mxu0
    %v783 = vadd.f32 %v669, %v782
    %v784 = vpop.f32.mrb[0].mxu0
    %v785 = vpop.f32.mrb[0].mxu0
    %v786 = vadd.f32 %v669, %v785
    %v787 = vpop.f32.mrb[0].mxu0
    %788 = vmatprep.mubr.bf16.mxu0 0
    %789 = vmatmul.mubr.bf16.gmra.mrb[0].mxu0 %v703
    %v790 = vpop.f32.mrb[0].mxu0
    %v791 = vadd.f32 %v669, %v790
    %v792 = vpop.f32.mrb[0].mxu0
    %v793 = vpop.f32.mrb[0].mxu0
    %v794 = vadd.f32 %v669, %v793
    %v795 = vpop.f32.mrb[0].mxu0
    %796 = vmatprep.mubr.bf16.mxu0 0
    %797 = vmatmul.mubr.bf16.gmra.mrb[0].mxu0 %v706
    %v798 = vpop.f32.mrb[0].mxu0
    %v799 = vadd.f32 %v669, %v798
    %v800 = vpop.f32.mrb[0].mxu0
    %v801 = vpop.f32.mrb[0].mxu0
    %v802 = vadd.f32 %v669, %v801
    %v803 = vpop.f32.mrb[0].mxu0
    %804 = vdwg.mxu0
    %v805 = vmax.f32 %v743, 0.0
    %v806 = vmax.f32 %v746, 0.0
    %v807 = vmax.f32 %v751, 0.0
    %v808 = vmax.f32 %v754, 0.0
    %v809 = vmax.f32 %v759, 0.0
    %v810 = vmax.f32 %v762, 0.0
    %v811 = vmax.f32 %v767, 0.0
    %v812 = vmax.f32 %v770, 0.0
    %v813 = vmax.f32 %v775, 0.0
    %v814 = vmax.f32 %v778, 0.0
    %v815 = vmax.f32 %v783, 0.0
    %v816 = vmax.f32 %v786, 0.0
    %v817 = vmax.f32 %v791, 0.0
    %v818 = vmax.f32 %v794, 0.0
    %v819 = vmax.f32 %v799, 0.0
    %v820 = vmax.f32 %v802, 0.0
    %v821 = vpack.c.bf16 %v806, %v805
    %v822 = vpack.c.bf16 %v808, %v807
    %v823 = vpack.c.bf16 %v810, %v809
    %v824 = vpack.c.bf16 %v812, %v811
    %v825 = vpack.c.bf16 %v814, %v813
    %v826 = vpack.c.bf16 %v816, %v815
    %v827 = vpack.c.bf16 %v818, %v817
    %v828 = vpack.c.bf16 %v820, %v819
    %v829 = vld [vmem:[%s9] sm:$0xf]
    %v830 = vld [vmem:[%s9 + $0x4] sm:$0xf]
    %v831 = vld [vmem:[%s9 + $0x8] sm:$0xf]
    %v832 = vld [vmem:[%s9 + $0xc] sm:$0xf]
    %v833 = vld [vmem:[%s10] sm:$0x1]
    %v835 = vlaneseq
    %v836 = vshrl.u32 %v835, 7
    %v837 = vsub.s32 0, %v836
    %v838 = vrot.slane %v833, %v837
    %v844 = vunpack.c.l.b16 %v829
    %v845 = vunpack.c.l.b16 %v830
    %v846 = vunpack.c.l.b16 %v831
    %v847 = vunpack.c.l.b16 %v832
    %v848 = vpack.c.b16 %v845, %v844
    %v849 = vpack.c.b16 %v847, %v846
    %v853 = vsel %vm683, %v821, 0
    %v856 = vsel %vm683, %v822, 0
    %v859 = vsel %vm683, %v823, 0
    %v862 = vsel %vm683, %v824, 0
    %v865 = vsel %vm683, %v825, 0
    %v868 = vsel %vm683, %v826, 0
    %v871 = vsel %vm683, %v827, 0
    %v874 = vsel %vm683, %v828, 0
    %876 = vmatprep.subr.bf16.mxu0 0
    %877 = vmatpush1.bf16.msra.mxu0 %v848
    %878 = vmatprep.subr.bf16.mxu0 0
    %879 = vmatpush1.bf16.msra.mxu0 %v849
    %880 = vmatprep.subr.bf16.mxu0 0
    %881 = vmatpush1.bf16.msra.mxu0 0
    %882 = vmatprep.subr.bf16.mxu0 0
    %883 = vmatpush1.bf16.msra.mxu0 0
    %884 = vmatprep.subr.bf16.mxu0 0
    %885 = vmatpush1.bf16.msra.mxu0 0
    %886 = vmatprep.subr.bf16.mxu0 0
    %887 = vmatpush1.bf16.msra.mxu0 0
    %888 = vmatprep.subr.bf16.mxu0 0
    %889 = vmatpush1.bf16.msra.mxu0 0
    %890 = vmatprep.subr.bf16.mxu0 0
    %891 = vmatpush1.bf16.msra.mxu0 0
    %892 = vmatprep.subr.bf16.mxu0 0
    %893 = vmatpush1.bf16.msra.mxu0 0
    %894 = vmatprep.subr.bf16.mxu0 0
    %895 = vmatpush1.bf16.msra.mxu0 0
    %896 = vmatprep.subr.bf16.mxu0 0
    %897 = vmatpush1.bf16.msra.mxu0 0
    %898 = vmatprep.subr.bf16.mxu0 0
    %899 = vmatpush1.bf16.msra.mxu0 0
    %900 = vmatprep.subr.bf16.mxu0 0
    %901 = vmatpush1.bf16.msra.mxu0 0
    %902 = vmatprep.subr.bf16.mxu0 0
    %903 = vmatpush1.bf16.msra.mxu0 0
    %904 = vmatprep.subr.bf16.mxu0 0
    %905 = vmatpush1.bf16.msra.mxu0 0
    %906 = vmatprep.subr.bf16.mxu0 0
    %907 = vmatpush1.bf16.msra.mxu0 0
    %908 = vmatprep.mubr.bf16.mxu0 0
    %909 = vmatmul.mubr.bf16.gmra.mrb[0].mxu0 %v853
    %v910 = vpop.f32.mrb[0].mxu0
    %v911 = vadd.f32 %v838, %v910
    %v912 = vpop.f32.mrb[0].mxu0
    %v913 = vpop.f32.mrb[0].mxu0
    %v914 = vadd.f32 %v838, %v913
    %v915 = vpop.f32.mrb[0].mxu0
    %916 = vmatprep.mubr.bf16.mxu0 0
    %917 = vmatmul.mubr.bf16.gmra.mrb[0].mxu0 %v856
    %v918 = vpop.f32.mrb[0].mxu0
    %v919 = vadd.f32 %v838, %v918
    %v920 = vpop.f32.mrb[0].mxu0
    %v921 = vpop.f32.mrb[0].mxu0
    %v922 = vadd.f32 %v838, %v921
    %v923 = vpop.f32.mrb[0].mxu0
    %924 = vmatprep.mubr.bf16.mxu0 0
    %925 = vmatmul.mubr.bf16.gmra.mrb[0].mxu0 %v859
    %v926 = vpop.f32.mrb[0].mxu0
    %v927 = vadd.f32 %v838, %v926
    %v928 = vpop.f32.mrb[0].mxu0
    %v929 = vpop.f32.mrb[0].mxu0
    %v930 = vadd.f32 %v838, %v929
    %v931 = vpop.f32.mrb[0].mxu0
    %932 = vmatprep.mubr.bf16.mxu0 0
    %933 = vmatmul.mubr.bf16.gmra.mrb[0].mxu0 %v862
    %v934 = vpop.f32.mrb[0].mxu0
    %v935 = vadd.f32 %v838, %v934
    %v936 = vpop.f32.mrb[0].mxu0
    %v937 = vpop.f32.mrb[0].mxu0
    %v938 = vadd.f32 %v838, %v937
    %v939 = vpop.f32.mrb[0].mxu0
    %940 = vmatprep.mubr.bf16.mxu0 0
    %941 = vmatmul.mubr.bf16.gmra.mrb[0].mxu0 %v865
    %v942 = vpop.f32.mrb[0].mxu0
    %v943 = vadd.f32 %v838, %v942
    %v944 = vpop.f32.mrb[0].mxu0
    %v945 = vpop.f32.mrb[0].mxu0
    %v946 = vadd.f32 %v838, %v945
    %v947 = vpop.f32.mrb[0].mxu0
    %948 = vmatprep.mubr.bf16.mxu0 0
    %949 = vmatmul.mubr.bf16.gmra.mrb[0].mxu0 %v868
    %v950 = vpop.f32.mrb[0].mxu0
    %v951 = vadd.f32 %v838, %v950
    %v952 = vpop.f32.mrb[0].mxu0
    %v953 = vpop.f32.mrb[0].mxu0
    %v954 = vadd.f32 %v838, %v953
    %v955 = vpop.f32.mrb[0].mxu0
    %956 = vmatprep.mubr.bf16.mxu0 0
    %957 = vmatmul.mubr.bf16.gmra.mrb[0].mxu0 %v871
    %v958 = vpop.f32.mrb[0].mxu0
    %v959 = vadd.f32 %v838, %v958
    %v960 = vpop.f32.mrb[0].mxu0
    %v961 = vpop.f32.mrb[0].mxu0
    %v962 = vadd.f32 %v838, %v961
    %v963 = vpop.f32.mrb[0].mxu0
    %964 = vmatprep.mubr.bf16.mxu0 0
    %965 = vmatmul.mubr.bf16.gmra.mrb[0].mxu0 %v874
    %v966 = vpop.f32.mrb[0].mxu0
    %v967 = vadd.f32 %v838, %v966
    %v968 = vpop.f32.mrb[0].mxu0
    %v969 = vpop.f32.mrb[0].mxu0
    %v970 = vadd.f32 %v838, %v969
    %v971 = vpop.f32.mrb[0].mxu0
    %972 = vdwg.mxu0
    %v973 = vmax.f32 %v911, 0.0
    %v974 = vmax.f32 %v914, 0.0
    %v975 = vmax.f32 %v919, 0.0
    %v976 = vmax.f32 %v922, 0.0
    %v977 = vmax.f32 %v927, 0.0
    %v978 = vmax.f32 %v930, 0.0
    %v979 = vmax.f32 %v935, 0.0
    %v980 = vmax.f32 %v938, 0.0
    %v981 = vmax.f32 %v943, 0.0
    %v982 = vmax.f32 %v946, 0.0
    %v983 = vmax.f32 %v951, 0.0
    %v984 = vmax.f32 %v954, 0.0
    %v985 = vmax.f32 %v959, 0.0
    %v986 = vmax.f32 %v962, 0.0
    %v987 = vmax.f32 %v967, 0.0
    %v988 = vmax.f32 %v970, 0.0
    %v989 = vld [vmem:[%s11] sm:$0x1]
    %v990 = vpack.c.bf16 %v974, %v973
    %v991 = vpack.c.bf16 %v976, %v975
    %v992 = vpack.c.bf16 %v978, %v977
    %v993 = vpack.c.bf16 %v980, %v979
    %v994 = vpack.c.bf16 %v982, %v981
    %v995 = vpack.c.bf16 %v984, %v983
    %v996 = vpack.c.bf16 %v986, %v985
    %v997 = vpack.c.bf16 %v988, %v987
    %s998 = sld [smem:[#allocation2]]
    %v999 = vstv %s998
    %v1001 = vsel %vm683, %v989, 0
    %v1004 = vsel %vm683, %v990, 0
    %v1007 = vsel %vm683, %v991, 0
    %v1010 = vsel %vm683, %v992, 0
    %v1013 = vsel %vm683, %v993, 0
    %v1016 = vsel %vm683, %v994, 0
    %v1019 = vsel %vm683, %v995, 0
    %v1022 = vsel %vm683, %v996, 0
    %v1025 = vsel %vm683, %v997, 0
    %1027 = vmatprep.subr.bf16.mxu0 0
    %1028 = vmatpush1.bf16.xpose.msra.mxu0 %v1004
    %1029 = vmatprep.subr.bf16.mxu0 0
    %1030 = vmatpush1.bf16.xpose.msra.mxu0 %v1007
    %1031 = vmatprep.subr.bf16.mxu0 0
    %1032 = vmatpush1.bf16.xpose.msra.mxu0 %v1010
    %1033 = vmatprep.subr.bf16.mxu0 0
    %1034 = vmatpush1.bf16.xpose.msra.mxu0 %v1013
    %1035 = vmatprep.subr.bf16.mxu0 0
    %1036 = vmatpush1.bf16.xpose.msra.mxu0 %v1016
    %1037 = vmatprep.subr.bf16.mxu0 0
    %1038 = vmatpush1.bf16.xpose.msra.mxu0 %v1019
    %1039 = vmatprep.subr.bf16.mxu0 0
    %1040 = vmatpush1.bf16.xpose.msra.mxu0 %v1022
    %1041 = vmatprep.subr.bf16.mxu0 0
    %1042 = vmatpush1.bf16.xpose.msra.mxu0 %v1025
    %1043 = vmatprep.subr.bf16.mxu0 0
    %1044 = vmatpush1.bf16.xpose.msra.mxu0 0
    %1045 = vmatprep.subr.bf16.mxu0 0
    %1046 = vmatpush1.bf16.xpose.msra.mxu0 0
    %1047 = vmatprep.subr.bf16.mxu0 0
    %1048 = vmatpush1.bf16.xpose.msra.mxu0 0
    %1049 = vmatprep.subr.bf16.mxu0 0
    %1050 = vmatpush1.bf16.xpose.msra.mxu0 0
    %1051 = vmatprep.subr.bf16.mxu0 0
    %1052 = vmatpush1.bf16.xpose.msra.mxu0 0
    %1053 = vmatprep.subr.bf16.mxu0 0
    %1054 = vmatpush1.bf16.xpose.msra.mxu0 0
    %1055 = vmatprep.subr.bf16.mxu0 0
    %1056 = vmatpush1.bf16.xpose.msra.mxu0 0
    %1057 = vmatprep.subr.bf16.mxu0 0
    %1058 = vmatpush1.bf16.xpose.msra.mxu0 0
    %1059 = vmatprep.mubr.bf16.mxu0 0
    %1060 = vmatmul.mubr.bf16.gmra.mrb[0].mxu0 %v1001
    %v1061 = vpop.f32.mrb[0].mxu0
    %v1062 = vadd.f32 %v999, %v1061
    %v1063 = vpop.f32.mrb[0].mxu0
    %v1064 = vpop.f32.mrb[0].mxu0
    %v1065 = vpop.f32.mrb[0].mxu0
    %1066 = vdwg.mxu0
    %v1067 = vxor.u32 %v1062, 2147483648
    %v1068 = vmul.f32 %v1067, 1.442695
    %v1069 = vpow.pop %v1068
    %v1070 = vadd.f32 %v1069, 1.0
    %v1071 = vrcp.pop %v1070
    %v1072 = vmul.f32 1.0, %v1071
    %1073 = vst [vmem:[#allocation3] sm:$0x1] %v1072
    // Predicated region
    $region54: #{tpu_custom_call.1} parent=1 // pred_check
      _
    $region55: #{tpu_custom_call.1} parent=1 // pred_check_branch
      %1075 = sbr.rel (0) target = $region57
    $region56: #{tpu_custom_call.1} parent=1 // pred_region
      %s1077 = ssub.s32 16, 16
      %1078 = vsyncadd [#allocation4], %s1077
      %s1080 = sshll.u32 [#allocation3], 4
      %s1081 = int_to_ptr.vmem [resolvable:$true] %s1080
      %1083 = dma.vmem_to_hbm [thread:$0]  %s1081, 16, %s13, [#allocation4]
    $region57: #{tpu_custom_call.1} parent=1 // pred_fallthru
      _
    // Predicated region
    $region58: #{tpu_custom_call.1} parent=1 // pred_check
      _
    $region59: #{tpu_custom_call.1} parent=1 // pred_check_branch
      %1085 = sbr.rel (0) target = $region61
    $region60: #{tpu_custom_call.1} parent=1 // pred_region
      %1086 = dma.done [#allocation4], 16
    $region61: #{tpu_custom_call.1} parent=1 // pred_fallthru
      _
    %1087 = vsyncpa [#allocation4], 1

</llo_original>
